<compile_context>
chip_gen: v5e
topology: v5e:2x2
jax: 0.10.0
libtpu: 0.0.40
codegen_flags: <defaults>
</compile_context>

<pallas_src>
import jax
import jax.numpy as jnp
from jax.experimental import pallas as pl
from jax.experimental.pallas import tpu as pltpu


def _round_up(n, m):
    return ((n + m - 1) // m) * m


def _vmem_capacity_bytes():
    """Per-TensorCore VMEM capacity, with safe fallbacks."""
    try:
        cap = getattr(pltpu.get_tpu_info(), "vmem_capacity_bytes", None)
        if cap:
            return int(cap)
    except Exception:
        pass
    try:
        kind = jax.devices()[0].device_kind.lower()
        if "v7" not in kind:
            return 128 * 1024 * 1024          # v5e / v6e: 128 MiB per TC
    except Exception:
        pass
    return 64 * 1024 * 1024                   # v7x-safe fallback


def _num_tensorcores_per_chip():
    try:
        kind = jax.devices()[0].device_kind.lower()
        if "v7" in kind:
            return 2                           # v7x: 2 TCs per chip
    except Exception:
        pass
    return 1                                   # v5e / v6e: 1 TC per chip


def sae_kernel(x_ref,
               w1_ref, b1_ref,
               w2_ref, b2_ref,
               w3_ref, b3_ref,
               w4_ref, b4_ref,
               o_ref):
    """Whole 4-layer MLP hot path on one (tb, M) batch tile, all in VMEM.

    MXU operands are in the weights' dtype (bf16 fast path or f32), the
    accumulation is f32, bias add + sigmoid stay in f32, and the result is
    cast exactly once at the final store.  The f32 -> compute-dtype cast of x
    happens here (VPU work hidden under the tile DMA), not on the host.
    """
    cd = w1_ref.dtype
    mm = lambda a, w: jnp.dot(a, w, preferred_element_type=jnp.float32)

    x = x_ref[...].astype(cd)                                        # (tb, M)
    h = jax.nn.sigmoid(mm(x, w1_ref[...]) + b1_ref[...])             # (tb, 20) f32
    h = jax.nn.sigmoid(mm(h.astype(cd), w2_ref[...]) + b2_ref[...])  # (tb, 10) f32
    h = jax.nn.sigmoid(mm(h.astype(cd), w3_ref[...]) + b3_ref[...])  # (tb, 20) f32
    y = mm(h.astype(cd), w4_ref[...]) + b4_ref[...]                  # (tb, M)  f32

    o_ref[...] = y.astype(o_ref.dtype)


def sae_forward(x, params, *, compute_dtype=jnp.bfloat16, out_dtype=None, tb=None):
    """x: (B, M) float32.  params: dict of transposed weights / (1, n) biases.

    Returns the (B, M) reconstruction in `out_dtype` (defaults to x.dtype,
    matching the PyTorch module).  `tb=None` auto-sizes the batch tile.
    """
    B, M = x.shape
    out_dtype = x.dtype if out_dtype is None else out_dtype
    x_bytes = jnp.dtype(x.dtype).itemsize
    cd_bytes = jnp.dtype(compute_dtype).itemsize
    out_bytes = jnp.dtype(out_dtype).itemsize

    # Weights feed the MXU -> compute dtype; biases stay f32 (f32 VPU add).
    w1 = params["w1"].astype(compute_dtype)   # (M, 20)
    w2 = params["w2"].astype(compute_dtype)   # (20, 10)
    w3 = params["w3"].astype(compute_dtype)   # (10, 20)
    w4 = params["w4"].astype(compute_dtype)   # (20, M)
    b1 = params["b1"].astype(jnp.float32)     # (1, 20)
    b2 = params["b2"].astype(jnp.float32)     # (1, 10)
    b3 = params["b3"].astype(jnp.float32)     # (1, 20)
    b4 = params["b4"].astype(jnp.float32)     # (1, M)
    weight_bytes = sum(int(a.size) * a.dtype.itemsize
                       for a in (w1, b1, w2, b2, w3, b3, w4, b4))

    vmem_cap = _vmem_capacity_bytes()
    n_tc = _num_tensorcores_per_chip()

    ROW = 16  # sublane-friendly row granularity for f32/bf16 tiles
    # VMEM bytes per batch row: double-buffered x tile + double-buffered out
    # tile + f32 layer-4 accumulator + in-kernel compute-dtype copy of x
    # (+ small slack for the tiny hidden activations).
    bytes_per_row = M * (2 * x_bytes + 2 * out_bytes + 4 + cd_bytes) + 512

    if tb is None:
        budget = int(0.70 * vmem_cap) - 2 * weight_bytes
        max_tb_vmem = max(ROW, budget // bytes_per_row)
        # ~4 MiB of f32 input per tile amortizes the ~0.35 us per-step cost.
        tb_target = max(ROW, (4 * 1024 * 1024) // (M * x_bytes))
        tb_eff = min(tb_target, max_tb_vmem)
        tb_eff = max(ROW, (tb_eff // ROW) * ROW)
        # v7x only: keep an even number (>=2) of grid steps so both
        # TensorCores get balanced work; skip on single-TC v5e/v6e.
        if n_tc > 1 and B >= 2 * ROW:
            steps = max(2, pl.cdiv(B, tb_eff))
            if steps % 2:
                steps += 1
            tb_eff = max(ROW, _round_up(pl.cdiv(B, steps), ROW))
    else:
        tb_eff = max(ROW, (int(tb) // ROW) * ROW)

    if tb_eff >= B:
        tb_eff = B  # one exact full-batch block (full-dim blocks are always legal)

    grid_steps = pl.cdiv(B, tb_eff)  # last tile may be ragged; no host padding

    vmem_need = tb_eff * bytes_per_row + 2 * weight_bytes + 8 * 1024 * 1024
    vmem_limit = int(min(max(vmem_need, 32 * 1024 * 1024), int(0.9 * vmem_cap)))

    # Weight/bias blocks are the full arrays, replicated across the batch grid
    # (grid-invariant index_map -> never re-fetched); only x / out are tiled.
    # NOTE(perf, v7x large-M): pipeline_mode=pl.Buffered(1) on these specs
    # would hand back ~weight_bytes of VMEM; left at default here since the
    # SAE weights are tiny relative to the batch tiles.
    full = lambda arr: pl.BlockSpec(arr.shape, lambda i: (0, 0))

    out = pl.pallas_call(
        sae_kernel,
        out_shape=jax.ShapeDtypeStruct((B, M), out_dtype),
        grid_spec=pltpu.PrefetchScalarGridSpec(
            num_scalar_prefetch=0,
            grid=(grid_steps,),
            in_specs=[
                pl.BlockSpec((tb_eff, M), lambda i: (i, 0)),   # x tile (f32)
                full(w1), full(b1),
                full(w2), full(b2),
                full(w3), full(b3),
                full(w4), full(b4),
            ],
            out_specs=pl.BlockSpec((tb_eff, M), lambda i: (i, 0)),
        ),
        compiler_params=pltpu.CompilerParams(
            dimension_semantics=("parallel",),
            vmem_limit_bytes=vmem_limit),
    )(x, w1, b1, w2, b2, w3, b3, w4, b4)

    return out


def init_params(key, no_movies):
    """PyTorch-style Linear init: U(-1/sqrt(fan_in), 1/sqrt(fan_in)).

    Weights are stored transposed, i.e. (in_features, out_features)."""
    dims = [(no_movies, 20), (20, 10), (10, 20), (20, no_movies)]
    params = {}
    for n, (fan_in, fan_out) in enumerate(dims, start=1):
        key, kw, kb = jax.random.split(key, 3)
        bound = 1.0 / jnp.sqrt(jnp.float32(fan_in))
        params[f"w{n}"] = jax.random.uniform(
            kw, (fan_in, fan_out), jnp.float32, -bound, bound)
        params[f"b{n}"] = jax.random.uniform(
            kb, (1, fan_out), jnp.float32, -bound, bound)
    return params


def sae_reference(x, p):
    """Plain-JAX f32 reference of the same forward pass (sanity check)."""
    h = jax.nn.sigmoid(x @ p["w1"] + p["b1"])
    h = jax.nn.sigmoid(h @ p["w2"] + p["b2"])
    h = jax.nn.sigmoid(h @ p["w3"] + p["b3"])
    return h @ p["w4"] + p["b4"]


if __name__ == "__main__":
    # Small synthetic "ratings" problem: 8 users x 256 movies.
    NO_MOVIES = 256
    BATCH = 8

    key = jax.random.PRNGKey(0)
    key, kx = jax.random.split(key)
    x = jax.random.uniform(kx, (BATCH, NO_MOVIES), jnp.float32, 0.0, 5.0)

    params = init_params(key, NO_MOVIES)
    ref = sae_reference(x, params)

    # Fast path: bf16 MXU operands, f32 accumulation/activations, f32 output.
    out = jax.block_until_ready(sae_forward(x, params))
    assert out.shape == (BATCH, NO_MOVIES)
    assert out.dtype == x.dtype
    assert jnp.allclose(out, ref, atol=1e-1, rtol=1e-1)

    # Full f32 compute path for a tight numerical check.
    out_f32 = jax.block_until_ready(
        sae_forward(x, params, compute_dtype=jnp.float32))
    assert jnp.allclose(out_f32, ref, atol=1e-5, rtol=1e-5)

    # Ragged multi-tile path (grid = cdiv(B, tb), last tile overhangs HBM):
    # exercises the no-pad / no-slice wrapper with B not a multiple of tb.
    key, kx2 = jax.random.split(key)
    x2 = jax.random.uniform(kx2, (40, NO_MOVIES), jnp.float32, 0.0, 5.0)
    ref2 = sae_reference(x2, params)
    out2 = jax.block_until_ready(sae_forward(x2, params, tb=16))
    assert out2.shape == (40, NO_MOVIES)
    assert jnp.allclose(out2, ref2, atol=1e-1, rtol=1e-1)

    print("KERNEL_OK")
</pallas_src>

<mosaic_0001>
module attributes {stable_mosaic.version = 11 : i64} {
  func.func @sae_kernel(%arg0: i32, %arg1: memref<8x256xf32, #tpu.memory_space<vmem>>, %arg2: memref<256x20xbf16, #tpu.memory_space<vmem>>, %arg3: memref<1x20xf32, #tpu.memory_space<vmem>>, %arg4: memref<20x10xbf16, #tpu.memory_space<vmem>>, %arg5: memref<1x10xf32, #tpu.memory_space<vmem>>, %arg6: memref<10x20xbf16, #tpu.memory_space<vmem>>, %arg7: memref<1x20xf32, #tpu.memory_space<vmem>>, %arg8: memref<20x256xbf16, #tpu.memory_space<vmem>>, %arg9: memref<1x256xf32, #tpu.memory_space<vmem>>, %arg10: memref<8x256xf32, #tpu.memory_space<vmem>>) attributes {dimension_semantics = [#tpu.dimension_semantics<parallel>], iteration_bounds = array<i64: 1>, scalar_prefetch = 0 : i64, scratch_operands = 0 : i64, tpu.core_type = #tpu.core_type<tc>, window_params = [{transform_indices = @transform_0, window_bounds = array<i64: 8, 256>}, {pipeline_mode = #tpu.pipeline_mode<synchronous>, transform_indices = @transform_1, window_bounds = array<i64: 256, 20>}, {pipeline_mode = #tpu.pipeline_mode<synchronous>, transform_indices = @transform_2, window_bounds = array<i64: 1, 20>}, {pipeline_mode = #tpu.pipeline_mode<synchronous>, transform_indices = @transform_3, window_bounds = array<i64: 20, 10>}, {pipeline_mode = #tpu.pipeline_mode<synchronous>, transform_indices = @transform_4, window_bounds = array<i64: 1, 10>}, {pipeline_mode = #tpu.pipeline_mode<synchronous>, transform_indices = @transform_5, window_bounds = array<i64: 10, 20>}, {pipeline_mode = #tpu.pipeline_mode<synchronous>, transform_indices = @transform_6, window_bounds = array<i64: 1, 20>}, {pipeline_mode = #tpu.pipeline_mode<synchronous>, transform_indices = @transform_7, window_bounds = array<i64: 20, 256>}, {pipeline_mode = #tpu.pipeline_mode<synchronous>, transform_indices = @transform_8, window_bounds = array<i64: 1, 256>}, {transform_indices = @transform_9, window_bounds = array<i64: 8, 256>}]} {
    %c0 = arith.constant 0 : index
    %c0_0 = arith.constant 0 : index
    %0 = vector.load %arg1[%c0, %c0_0] : memref<8x256xf32, #tpu.memory_space<vmem>>, vector<8x256xf32>
    %1 = arith.truncf %0 : vector<8x256xf32> to vector<8x256xbf16>
    %c0_1 = arith.constant 0 : index
    %c0_2 = arith.constant 0 : index
    %2 = vector.load %arg2[%c0_1, %c0_2] : memref<256x20xbf16, #tpu.memory_space<vmem>>, vector<256x20xbf16>
    %cst = arith.constant dense<0.000000e+00> : vector<8x20xf32>
    %3 = tpu.matmul %1, %2, %cst {dimension_numbers = #tpu.dot_dimension_numbers<[1], [0], [0], [1], [0, 0, 1, 1], [], []>} : vector<8x256xbf16>, vector<256x20xbf16>, vector<8x20xf32> -> vector<8x20xf32>
    %c0_3 = arith.constant 0 : index
    %c0_4 = arith.constant 0 : index
    %4 = vector.load %arg3[%c0_3, %c0_4] : memref<1x20xf32, #tpu.memory_space<vmem>>, vector<1x20xf32>
    %5 = vector.broadcast %4 : vector<1x20xf32> to vector<8x20xf32>
    %6 = arith.addf %3, %5 : vector<8x20xf32>
    %7 = arith.negf %6 : vector<8x20xf32>
    %8 = math.exp %7 : vector<8x20xf32>
    %cst_5 = arith.constant 1.000000e+00 : f32
    %9 = vector.broadcast %cst_5 : f32 to vector<8x20xf32>
    %10 = arith.addf %9, %8 : vector<8x20xf32>
    %11 = arith.divf %9, %10 : vector<8x20xf32>
    %12 = arith.truncf %11 : vector<8x20xf32> to vector<8x20xbf16>
    %c0_6 = arith.constant 0 : index
    %c0_7 = arith.constant 0 : index
    %13 = vector.load %arg4[%c0_6, %c0_7] : memref<20x10xbf16, #tpu.memory_space<vmem>>, vector<20x10xbf16>
    %cst_8 = arith.constant dense<0.000000e+00> : vector<8x10xf32>
    %14 = tpu.matmul %12, %13, %cst_8 {dimension_numbers = #tpu.dot_dimension_numbers<[1], [0], [0], [1], [0, 0, 1, 1], [], []>} : vector<8x20xbf16>, vector<20x10xbf16>, vector<8x10xf32> -> vector<8x10xf32>
    %c0_9 = arith.constant 0 : index
    %c0_10 = arith.constant 0 : index
    %15 = vector.load %arg5[%c0_9, %c0_10] : memref<1x10xf32, #tpu.memory_space<vmem>>, vector<1x10xf32>
    %16 = vector.broadcast %15 : vector<1x10xf32> to vector<8x10xf32>
    %17 = arith.addf %14, %16 : vector<8x10xf32>
    %18 = arith.negf %17 : vector<8x10xf32>
    %19 = math.exp %18 : vector<8x10xf32>
    %cst_11 = arith.constant 1.000000e+00 : f32
    %20 = vector.broadcast %cst_11 : f32 to vector<8x10xf32>
    %21 = arith.addf %20, %19 : vector<8x10xf32>
    %22 = arith.divf %20, %21 : vector<8x10xf32>
    %23 = arith.truncf %22 : vector<8x10xf32> to vector<8x10xbf16>
    %c0_12 = arith.constant 0 : index
    %c0_13 = arith.constant 0 : index
    %24 = vector.load %arg6[%c0_12, %c0_13] : memref<10x20xbf16, #tpu.memory_space<vmem>>, vector<10x20xbf16>
    %cst_14 = arith.constant dense<0.000000e+00> : vector<8x20xf32>
    %25 = tpu.matmul %23, %24, %cst_14 {dimension_numbers = #tpu.dot_dimension_numbers<[1], [0], [0], [1], [0, 0, 1, 1], [], []>} : vector<8x10xbf16>, vector<10x20xbf16>, vector<8x20xf32> -> vector<8x20xf32>
    %c0_15 = arith.constant 0 : index
    %c0_16 = arith.constant 0 : index
    %26 = vector.load %arg7[%c0_15, %c0_16] : memref<1x20xf32, #tpu.memory_space<vmem>>, vector<1x20xf32>
    %27 = vector.broadcast %26 : vector<1x20xf32> to vector<8x20xf32>
    %28 = arith.addf %25, %27 : vector<8x20xf32>
    %29 = arith.negf %28 : vector<8x20xf32>
    %30 = math.exp %29 : vector<8x20xf32>
    %cst_17 = arith.constant 1.000000e+00 : f32
    %31 = vector.broadcast %cst_17 : f32 to vector<8x20xf32>
    %32 = arith.addf %31, %30 : vector<8x20xf32>
    %33 = arith.divf %31, %32 : vector<8x20xf32>
    %34 = arith.truncf %33 : vector<8x20xf32> to vector<8x20xbf16>
    %c0_18 = arith.constant 0 : index
    %c0_19 = arith.constant 0 : index
    %35 = vector.load %arg8[%c0_18, %c0_19] : memref<20x256xbf16, #tpu.memory_space<vmem>>, vector<20x256xbf16>
    %cst_20 = arith.constant dense<0.000000e+00> : vector<8x256xf32>
    %36 = tpu.matmul %34, %35, %cst_20 {dimension_numbers = #tpu.dot_dimension_numbers<[1], [0], [0], [1], [0, 0, 1, 1], [], []>} : vector<8x20xbf16>, vector<20x256xbf16>, vector<8x256xf32> -> vector<8x256xf32>
    %c0_21 = arith.constant 0 : index
    %c0_22 = arith.constant 0 : index
    %37 = vector.load %arg9[%c0_21, %c0_22] : memref<1x256xf32, #tpu.memory_space<vmem>>, vector<1x256xf32>
    %38 = vector.broadcast %37 : vector<1x256xf32> to vector<8x256xf32>
    %39 = arith.addf %36, %38 : vector<8x256xf32>
    %c0_23 = arith.constant 0 : index
    %c0_24 = arith.constant 0 : index
    %40 = vector.load %arg10[%c0_23, %c0_24] : memref<8x256xf32, #tpu.memory_space<vmem>>, vector<8x256xf32>
    tpu.vector_store %arg10[%c0_23, %c0_24], %39 {strides = array<i32>} : memref<8x256xf32, #tpu.memory_space<vmem>>, vector<8x256xf32>,
    return
  }
  func.func @transform_0(%arg0: i32) -> (i32, i32) {
    %c0_i32 = arith.constant 0 : i32
    %c0_i32_0 = arith.constant 0 : i32
    return %arg0, %c0_i32 : i32, i32
  }
  func.func @transform_1(%arg0: i32) -> (i32, i32) {
    %c0_i32 = arith.constant 0 : i32
    %c0_i32_0 = arith.constant 0 : i32
    %c0_i32_1 = arith.constant 0 : i32
    return %c0_i32, %c0_i32_0 : i32, i32
  }
  func.func @transform_2(%arg0: i32) -> (i32, i32) {
    %c0_i32 = arith.constant 0 : i32
    %c0_i32_0 = arith.constant 0 : i32
    %c0_i32_1 = arith.constant 0 : i32
    return %c0_i32, %c0_i32_0 : i32, i32
  }
  func.func @transform_3(%arg0: i32) -> (i32, i32) {
    %c0_i32 = arith.constant 0 : i32
    %c0_i32_0 = arith.constant 0 : i32
    %c0_i32_1 = arith.constant 0 : i32
    return %c0_i32, %c0_i32_0 : i32, i32
  }
  func.func @transform_4(%arg0: i32) -> (i32, i32) {
    %c0_i32 = arith.constant 0 : i32
    %c0_i32_0 = arith.constant 0 : i32
    %c0_i32_1 = arith.constant 0 : i32
    return %c0_i32, %c0_i32_0 : i32, i32
  }
  func.func @transform_5(%arg0: i32) -> (i32, i32) {
    %c0_i32 = arith.constant 0 : i32
    %c0_i32_0 = arith.constant 0 : i32
    %c0_i32_1 = arith.constant 0 : i32
    return %c0_i32, %c0_i32_0 : i32, i32
  }
  func.func @transform_6(%arg0: i32) -> (i32, i32) {
    %c0_i32 = arith.constant 0 : i32
    %c0_i32_0 = arith.constant 0 : i32
    %c0_i32_1 = arith.constant 0 : i32
    return %c0_i32, %c0_i32_0 : i32, i32
  }
  func.func @transform_7(%arg0: i32) -> (i32, i32) {
    %c0_i32 = arith.constant 0 : i32
    %c0_i32_0 = arith.constant 0 : i32
    %c0_i32_1 = arith.constant 0 : i32
    return %c0_i32, %c0_i32_0 : i32, i32
  }
  func.func @transform_8(%arg0: i32) -> (i32, i32) {
    %c0_i32 = arith.constant 0 : i32
    %c0_i32_0 = arith.constant 0 : i32
    %c0_i32_1 = arith.constant 0 : i32
    return %c0_i32, %c0_i32_0 : i32, i32
  }
  func.func @transform_9(%arg0: i32) -> (i32, i32) {
    %c0_i32 = arith.constant 0 : i32
    %c0_i32_0 = arith.constant 0 : i32
    return %arg0, %c0_i32 : i32, i32
  }
}

</mosaic_0001>

<llo_original>
// kernel: tpu_custom_call.1
$region0: #{tpu_custom_call.1}
  #allocation0 [shape = 'u32[]', space=smem, size = 0x4, offset = 0x4, fixed_abs, tag = 'smem constant byte address 0x4 - core index']
  #allocation1 [shape = 'u32[72,128]{1,0:T(1,128)}', space=vmem, size = 0x9000, scoped, tag = 'internal scratch']
  %s0 = inlined_call_operand.vmem [shape: f32[8,256], index: 0, kind: input, shape index: {}]
  %s1 = inlined_call_operand.vmem [shape: bf16[256,20], index: 1, kind: input, shape index: {}]
  %s2 = inlined_call_operand.vmem [shape: f32[1,20], index: 2, kind: input, shape index: {}]
  %s3 = inlined_call_operand.vmem [shape: bf16[20,10], index: 3, kind: input, shape index: {}]
  %s4 = inlined_call_operand.vmem [shape: f32[1,10], index: 4, kind: input, shape index: {}]
  %s5 = inlined_call_operand.vmem [shape: bf16[10,20], index: 5, kind: input, shape index: {}]
  %s6 = inlined_call_operand.vmem [shape: f32[1,20], index: 6, kind: input, shape index: {}]
  %s7 = inlined_call_operand.vmem [shape: bf16[20,256], index: 7, kind: input, shape index: {}]
  %s8 = inlined_call_operand.vmem [shape: f32[1,256], index: 8, kind: input, shape index: {}]
  %s9 = inlined_call_operand.hbm [shape: f32[8,256], index: 9, kind: output, shape index: {}]
  %s10 = sld [smem:[#allocation0]]
  $region46: #{tpu_custom_call.1} parent=0
    _
  %s12 = ssub.s32 1, %s10
  %s13 = scalar_select 0, %s12, %s10
  $region1: #{tpu_custom_call.1} parent=0
    #allocation2 [shape = 'u8[8192]{0}', space=vmem, size = 0x2000, scoped, tag = 'output window, operand 0, single buffered']
    #allocation3 [shape = 's32[1]{0}', space=sflag, size = 0x4, scoped, tag = 'scoped memory for tpu_custom_call.1']
    %14 = vsyncpa [#allocation3], 0
    // Predicated region
    $region2: #{tpu_custom_call.1} parent=1 // pred_check
      _
    $region3: #{tpu_custom_call.1} parent=1 // pred_check_branch
      %16 = sbr.rel (0) target = $region5
    $region4: #{tpu_custom_call.1} parent=1 // pred_region
      _
    $region5: #{tpu_custom_call.1} parent=1 // pred_fallthru
      _
    // Predicated region
    $region6: #{tpu_custom_call.1} parent=1 // pred_check
      _
    $region7: #{tpu_custom_call.1} parent=1 // pred_check_branch
      %18 = sbr.rel (0) target = $region9
    $region8: #{tpu_custom_call.1} parent=1 // pred_region
      _
    $region9: #{tpu_custom_call.1} parent=1 // pred_fallthru
      _
    // Predicated region
    $region10: #{tpu_custom_call.1} parent=1 // pred_check
      _
    $region11: #{tpu_custom_call.1} parent=1 // pred_check_branch
      %20 = sbr.rel (0) target = $region13
    $region12: #{tpu_custom_call.1} parent=1 // pred_region
      _
    $region13: #{tpu_custom_call.1} parent=1 // pred_fallthru
      _
    // Predicated region
    $region14: #{tpu_custom_call.1} parent=1 // pred_check
      _
    $region15: #{tpu_custom_call.1} parent=1 // pred_check_branch
      %22 = sbr.rel (0) target = $region17
    $region16: #{tpu_custom_call.1} parent=1 // pred_region
      _
    $region17: #{tpu_custom_call.1} parent=1 // pred_fallthru
      _
    // Predicated region
    $region18: #{tpu_custom_call.1} parent=1 // pred_check
      _
    $region19: #{tpu_custom_call.1} parent=1 // pred_check_branch
      %24 = sbr.rel (0) target = $region21
    $region20: #{tpu_custom_call.1} parent=1 // pred_region
      _
    $region21: #{tpu_custom_call.1} parent=1 // pred_fallthru
      _
    // Predicated region
    $region22: #{tpu_custom_call.1} parent=1 // pred_check
      _
    $region23: #{tpu_custom_call.1} parent=1 // pred_check_branch
      %26 = sbr.rel (0) target = $region25
    $region24: #{tpu_custom_call.1} parent=1 // pred_region
      _
    $region25: #{tpu_custom_call.1} parent=1 // pred_fallthru
      _
    // Predicated region
    $region26: #{tpu_custom_call.1} parent=1 // pred_check
      _
    $region27: #{tpu_custom_call.1} parent=1 // pred_check_branch
      %28 = sbr.rel (0) target = $region29
    $region28: #{tpu_custom_call.1} parent=1 // pred_region
      _
    $region29: #{tpu_custom_call.1} parent=1 // pred_fallthru
      _
    // Predicated region
    $region30: #{tpu_custom_call.1} parent=1 // pred_check
      _
    $region31: #{tpu_custom_call.1} parent=1 // pred_check_branch
      %30 = sbr.rel (0) target = $region33
    $region32: #{tpu_custom_call.1} parent=1 // pred_region
      _
    $region33: #{tpu_custom_call.1} parent=1 // pred_fallthru
      _
    // Predicated region
    $region34: #{tpu_custom_call.1} parent=1 // pred_check
      _
    $region35: #{tpu_custom_call.1} parent=1 // pred_check_branch
      %32 = sbr.rel (0) target = $region37
    $region36: #{tpu_custom_call.1} parent=1 // pred_region
      _
    $region37: #{tpu_custom_call.1} parent=1 // pred_fallthru
      _
    %v34 = vld [vmem:[%s0] sm:$0xff]
    %v35 = vld [vmem:[%s0 + $0x8] sm:$0xff]
    %v36 = vpack.c.bf16 %v34, %v34
    %v37 = vpack.c.bf16 %v35, %v35
    %v38 = vld [vmem:[%s1] sm:$0xf]
    %v39 = vld [vmem:[%s1 + $0x4] sm:$0xf]
    %v40 = vld [vmem:[%s1 + $0x8] sm:$0xf]
    %v41 = vld [vmem:[%s1 + $0xc] sm:$0xf]
    %v42 = vld [vmem:[%s1 + $0x10] sm:$0xf]
    %v43 = vld [vmem:[%s1 + $0x14] sm:$0xf]
    %v44 = vld [vmem:[%s1 + $0x18] sm:$0xf]
    %v45 = vld [vmem:[%s1 + $0x1c] sm:$0xf]
    %v46 = vld [vmem:[%s1 + $0x20] sm:$0xf]
    %v47 = vld [vmem:[%s1 + $0x24] sm:$0xf]
    %v48 = vld [vmem:[%s1 + $0x28] sm:$0xf]
    %v49 = vld [vmem:[%s1 + $0x2c] sm:$0xf]
    %v50 = vld [vmem:[%s1 + $0x30] sm:$0xf]
    %v51 = vld [vmem:[%s1 + $0x34] sm:$0xf]
    %v52 = vld [vmem:[%s1 + $0x38] sm:$0xf]
    %v53 = vld [vmem:[%s1 + $0x3c] sm:$0xf]
    %v54 = vld [vmem:[%s1 + $0x40] sm:$0xf]
    %v55 = vld [vmem:[%s1 + $0x44] sm:$0xf]
    %v56 = vld [vmem:[%s1 + $0x48] sm:$0xf]
    %v57 = vld [vmem:[%s1 + $0x4c] sm:$0xf]
    %v58 = vld [vmem:[%s1 + $0x50] sm:$0xf]
    %v59 = vld [vmem:[%s1 + $0x54] sm:$0xf]
    %v60 = vld [vmem:[%s1 + $0x58] sm:$0xf]
    %v61 = vld [vmem:[%s1 + $0x5c] sm:$0xf]
    %v62 = vld [vmem:[%s1 + $0x60] sm:$0xf]
    %v63 = vld [vmem:[%s1 + $0x64] sm:$0xf]
    %v64 = vld [vmem:[%s1 + $0x68] sm:$0xf]
    %v65 = vld [vmem:[%s1 + $0x6c] sm:$0xf]
    %v66 = vld [vmem:[%s1 + $0x70] sm:$0xf]
    %v67 = vld [vmem:[%s1 + $0x74] sm:$0xf]
    %v68 = vld [vmem:[%s1 + $0x78] sm:$0xf]
    %v69 = vld [vmem:[%s1 + $0x7c] sm:$0xf]
    %v70 = vld [vmem:[%s2] sm:$0x1]
    %v72 = vperm.slane %v70, 0
    %v106 = vunpack.c.l.b16 %v38
    %v107 = vunpack.c.l.b16 %v39
    %v108 = vunpack.c.l.b16 %v40
    %v109 = vunpack.c.l.b16 %v41
    %v110 = vunpack.c.l.b16 %v42
    %v111 = vunpack.c.l.b16 %v43
    %v112 = vunpack.c.l.b16 %v44
    %v113 = vunpack.c.l.b16 %v45
    %v114 = vunpack.c.l.b16 %v46
    %v115 = vunpack.c.l.b16 %v47
    %v116 = vunpack.c.l.b16 %v48
    %v117 = vunpack.c.l.b16 %v49
    %v118 = vunpack.c.l.b16 %v50
    %v119 = vunpack.c.l.b16 %v51
    %v120 = vunpack.c.l.b16 %v52
    %v121 = vunpack.c.l.b16 %v53
    %v122 = vunpack.c.l.b16 %v54
    %v123 = vunpack.c.l.b16 %v55
    %v124 = vunpack.c.l.b16 %v56
    %v125 = vunpack.c.l.b16 %v57
    %v126 = vunpack.c.l.b16 %v58
    %v127 = vunpack.c.l.b16 %v59
    %v128 = vunpack.c.l.b16 %v60
    %v129 = vunpack.c.l.b16 %v61
    %v130 = vunpack.c.l.b16 %v62
    %v131 = vunpack.c.l.b16 %v63
    %v132 = vunpack.c.l.b16 %v64
    %v133 = vunpack.c.l.b16 %v65
    %v134 = vunpack.c.l.b16 %v66
    %v135 = vunpack.c.l.b16 %v67
    %v136 = vunpack.c.l.b16 %v68
    %v137 = vunpack.c.l.b16 %v69
    %v138 = vpack.c.b16 %v107, %v106
    %v139 = vpack.c.b16 %v109, %v108
    %v140 = vpack.c.b16 %v111, %v110
    %v141 = vpack.c.b16 %v113, %v112
    %v142 = vpack.c.b16 %v115, %v114
    %v143 = vpack.c.b16 %v117, %v116
    %v144 = vpack.c.b16 %v119, %v118
    %v145 = vpack.c.b16 %v121, %v120
    %v146 = vpack.c.b16 %v123, %v122
    %v147 = vpack.c.b16 %v125, %v124
    %v148 = vpack.c.b16 %v127, %v126
    %v149 = vpack.c.b16 %v129, %v128
    %v150 = vpack.c.b16 %v131, %v130
    %v151 = vpack.c.b16 %v133, %v132
    %v152 = vpack.c.b16 %v135, %v134
    %v153 = vpack.c.b16 %v137, %v136
    %170 = vmatpush.bf16.msra.mxu0 %v145
    %171 = vmatpush.bf16.msra.mxu0 %v144
    %172 = vmatpush.bf16.msra.mxu0 %v143
    %173 = vmatpush.bf16.msra.mxu0 %v142
    %174 = vmatpush.bf16.msra.mxu0 %v141
    %175 = vmatpush.bf16.msra.mxu0 %v140
    %176 = vmatpush.bf16.msra.mxu0 %v139
    %177 = vmatpush.bf16.msra.mxu0 %v138
    %178 = vmatmul.bf16.gmra.mxu0 %v36
    %v179 = vpop.f32.mrf.mxu0
    %v180 = vadd.f32 %v72, %v179
    %v181 = vpop.f32.mrf.mxu0
    %182 = vdwg.mxu0
    %183 = vmatpush.bf16.msra.mxu0 %v153
    %184 = vmatpush.bf16.msra.mxu0 %v152
    %185 = vmatpush.bf16.msra.mxu0 %v151
    %186 = vmatpush.bf16.msra.mxu0 %v150
    %187 = vmatpush.bf16.msra.mxu0 %v149
    %188 = vmatpush.bf16.msra.mxu0 %v148
    %189 = vmatpush.bf16.msra.mxu0 %v147
    %190 = vmatpush.bf16.msra.mxu0 %v146
    %191 = vmatmul.bf16.gmra.mxu0 %v37
    %v192 = vpop.f32.mrf.mxu0
    %v193 = vadd.f32 %v180, %v192
    %v194 = vpop.f32.mrf.mxu0
    %195 = vdwg.mxu0
    %v196 = vxor.u32 %v193, 2147483648
    %v197 = vmul.f32 %v196, 1.442695
    %v198 = vpow.pop %v197
    %v199 = vadd.f32 %v198, 1.0
    %v200 = vrcp.pop %v199
    %v201 = vmul.f32 %v199, %v200
    %v202 = vsub.f32 1.0, %v201
    %v203 = vmul.f32 %v200, %v202
    %v204 = vadd.f32 %v200, %v203
    %vm205 = vweird.f32 %v199
    %vm206 = vweird.f32 %v200
    %vm207 = vmor %vm205, %vm206
    %v208 = vsel %vm207, %v200, %v204
    %v209 = vand.u32 2147483647, %v199
    %vm210 = vcmp.eq.f32.partialorder %v209, 8.507059e+37
    %v211 = vand.u32 %v199, 2147483648
    %v212 = vor.u32 1.1754944e-38, %v211
    %v213 = vsel %vm210, %v212, %v208
    %v214 = vmul.f32 1.0, %v213
    %v215 = vpack.c.bf16 %v214, %v214
    %v216 = vld [vmem:[%s3] sm:$0xf]
    %v217 = vld [vmem:[%s3 + $0x4] sm:$0xf]
    %v218 = vld [vmem:[%s3 + $0x8] sm:$0x3]
    %v219 = vld [vmem:[%s4] sm:$0x1]
    %v221 = vperm.slane %v219, 0
    %v226 = vunpack.c.l.b16 %v216
    %v227 = vunpack.c.l.b16 %v217
    %v228 = vunpack.c.l.b16 %v218
    %v229 = vpack.c.b16 %v227, %v226
    %v230 = vpack.c.b16 %v228, %v228
    %vm232 = vcmask 162816
    %v234 = vsel %vm232, %v215, 0
    %vm236 = vcmask 1041408
    %v238 = vsel %vm236, %v230, 0
    %240 = vmatpush.bf16.msra.mxu0 0
    %241 = vmatpush.bf16.msra.mxu0 0
    %242 = vmatpush.bf16.msra.mxu0 0
    %243 = vmatpush.bf16.msra.mxu0 0
    %244 = vmatpush.bf16.msra.mxu0 0
    %245 = vmatpush.bf16.msra.mxu0 0
    %246 = vmatpush.bf16.msra.mxu0 %v238
    %247 = vmatpush.bf16.msra.mxu0 %v229
    %248 = vmatmul.bf16.gmra.mxu0 %v234
    %v249 = vpop.f32.mrf.mxu0
    %v250 = vadd.f32 %v221, %v249
    %v251 = vpop.f32.mrf.mxu0
    %252 = vdwg.mxu0
    %v253 = vxor.u32 %v250, 2147483648
    %v254 = vmul.f32 %v253, 1.442695
    %v255 = vpow.pop %v254
    %v256 = vadd.f32 %v255, 1.0
    %v257 = vrcp.pop %v256
    %v258 = vmul.f32 %v256, %v257
    %v259 = vsub.f32 1.0, %v258
    %v260 = vmul.f32 %v257, %v259
    %v261 = vadd.f32 %v257, %v260
    %vm262 = vweird.f32 %v256
    %vm263 = vweird.f32 %v257
    %vm264 = vmor %vm262, %vm263
    %v265 = vsel %vm264, %v257, %v261
    %v266 = vand.u32 2147483647, %v256
    %vm267 = vcmp.eq.f32.partialorder %v266, 8.507059e+37
    %v268 = vand.u32 %v256, 2147483648
    %v269 = vor.u32 1.1754944e-38, %v268
    %v270 = vsel %vm267, %v269, %v265
    %v271 = vmul.f32 1.0, %v270
    %v272 = vpack.c.bf16 %v271, %v271
    %v273 = vld [vmem:[%s5] sm:$0xf]
    %v274 = vld [vmem:[%s5 + $0x4] sm:$0x1]
    %v275 = vld [vmem:[%s6] sm:$0x1]
    %v277 = vperm.slane %v275, 0
    %v281 = vunpack.c.l.b16 %v273
    %v282 = vunpack.c.l.b16 %v274
    %v283 = vpack.c.b16 %v282, %v281
    %vm284 = vcmask 80896
    %v286 = vsel %vm284, %v272, 0
    %vm288 = vcmask 1044480
    %v290 = vsel %vm288, %v283, 0
    %292 = vmatpush.bf16.msra.mxu0 0
    %293 = vmatpush.bf16.msra.mxu0 0
    %294 = vmatpush.bf16.msra.mxu0 0
    %295 = vmatpush.bf16.msra.mxu0 0
    %296 = vmatpush.bf16.msra.mxu0 0
    %297 = vmatpush.bf16.msra.mxu0 0
    %298 = vmatpush.bf16.msra.mxu0 0
    %299 = vmatpush.bf16.msra.mxu0 %v290
    %300 = vmatmul.bf16.gmra.mxu0 %v286
    %v301 = vpop.f32.mrf.mxu0
    %v302 = vadd.f32 %v277, %v301
    %v303 = vpop.f32.mrf.mxu0
    %304 = vdwg.mxu0
    %v305 = vxor.u32 %v302, 2147483648
    %v306 = vmul.f32 %v305, 1.442695
    %v307 = vpow.pop %v306
    %v308 = vadd.f32 %v307, 1.0
    %v309 = vrcp.pop %v308
    %v310 = vmul.f32 %v308, %v309
    %v311 = vsub.f32 1.0, %v310
    %v312 = vmul.f32 %v309, %v311
    %v313 = vadd.f32 %v309, %v312
    %vm314 = vweird.f32 %v308
    %vm315 = vweird.f32 %v309
    %vm316 = vmor %vm314, %vm315
    %v317 = vsel %vm316, %v309, %v313
    %v318 = vand.u32 2147483647, %v308
    %vm319 = vcmp.eq.f32.partialorder %v318, 8.507059e+37
    %v320 = vand.u32 %v308, 2147483648
    %v321 = vor.u32 1.1754944e-38, %v320
    %v322 = vsel %vm319, %v321, %v317
    %v323 = vmul.f32 1.0, %v322
    %v324 = vpack.c.bf16 %v323, %v323
    %v325 = vld [vmem:[%s7] sm:$0xff]
    %v326 = vld [vmem:[%s7 + $0x8] sm:$0xff]
    %v327 = vld [vmem:[%s7 + $0x10] sm:$0x33]
    %v328 = vld [vmem:[%s8] sm:$0x3]
    %v330 = vperm.slane %v328, 0
    %v331 = vperm.slane %v328, 1
    %v337 = vunpack.c.l.b16 %v325
    %v338 = vunpack.c.h.b16 %v325
    %v339 = vunpack.c.l.b16 %v326
    %v340 = vunpack.c.h.b16 %v326
    %v341 = vunpack.c.l.b16 %v327
    %v342 = vunpack.c.h.b16 %v327
    %v343 = vpack.c.b16 %v339, %v337
    %v344 = vpack.c.b16 %v340, %v338
    %v345 = vpack.c.b16 %v341, %v341
    %v346 = vpack.c.b16 %v342, %v342
    %v350 = vsel %vm232, %v324, 0
    %v353 = vsel %vm236, %v345, 0
    %v356 = vsel %vm236, %v346, 0
    %358 = vmatpush.bf16.msra.mxu0 0
    %359 = vmatpush.bf16.msra.mxu0 0
    %360 = vmatpush.bf16.msra.mxu0 0
    %361 = vmatpush.bf16.msra.mxu0 0
    %362 = vmatpush.bf16.msra.mxu0 0
    %363 = vmatpush.bf16.msra.mxu0 0
    %364 = vmatpush.bf16.msra.mxu0 %v353
    %365 = vmatpush.bf16.msra.mxu0 %v343
    %366 = vmatmul.bf16.gmra.mxu0 %v350
    %v367 = vpop.f32.mrf.mxu0
    %v368 = vadd.f32 %v330, %v367
    %v369 = vpop.f32.mrf.mxu0
    %370 = vdwg.mxu0
    %371 = vmatpush.bf16.msra.mxu0 0
    %372 = vmatpush.bf16.msra.mxu0 0
    %373 = vmatpush.bf16.msra.mxu0 0
    %374 = vmatpush.bf16.msra.mxu0 0
    %375 = vmatpush.bf16.msra.mxu0 0
    %376 = vmatpush.bf16.msra.mxu0 0
    %377 = vmatpush.bf16.msra.mxu0 %v356
    %378 = vmatpush.bf16.msra.mxu0 %v344
    %379 = vmatmul.bf16.gmra.mxu0 %v350
    %v380 = vpop.f32.mrf.mxu0
    %v381 = vadd.f32 %v331, %v380
    %v382 = vpop.f32.mrf.mxu0
    %383 = vdwg.mxu0
    %384 = vst [vmem:[#allocation2] sm:$0xff] %v368
    %385 = vst [vmem:[#allocation2 + $0x8] sm:$0xff] %v381
    // Predicated region
    $region38: #{tpu_custom_call.1} parent=1 // pred_check
      _
    $region39: #{tpu_custom_call.1} parent=1 // pred_check_branch
      %387 = sbr.rel (0) target = $region41
    $region40: #{tpu_custom_call.1} parent=1 // pred_region
      %389 = vsyncadd [#allocation3], 0
      %s391 = sshll.u32 [#allocation2], 4
      %s392 = int_to_ptr.vmem [resolvable:$true] %s391
      %s393 = sshll.u32 %s9, 4
      %s394 = int_to_ptr.hbm [resolvable:$true] %s393
      %396 = dma.vmem_to_hbm [thread:$0]  %s392, 256, %s394, [#allocation3]
    $region41: #{tpu_custom_call.1} parent=1 // pred_fallthru
      _
    // Predicated region
    $region42: #{tpu_custom_call.1} parent=1 // pred_check
      _
    $region43: #{tpu_custom_call.1} parent=1 // pred_check_branch
      %398 = sbr.rel (0) target = $region45
    $region44: #{tpu_custom_call.1} parent=1 // pred_region
      %400 = dma.done [#allocation3], 256
    $region45: #{tpu_custom_call.1} parent=1 // pred_fallthru
      _
    %401 = vsyncpa [#allocation3], 1

</llo_original>
